<compile_context>
chip_gen: v7x
topology: tpu7x:2x2x1
jax: 0.10.0
libtpu: 0.0.40
codegen_flags: <defaults>
</compile_context>

<pallas_src>
import functools
from typing import NamedTuple

import jax
import jax.numpy as jnp
from jax.experimental import pallas as pl
from jax.experimental.pallas import tpu as pltpu

_LANE = 128
_SUBLANE = 8
_MAX_TILE_O = 512      # output-tile width (lanes) in the per-layer kernel
_MAX_TILE_K = 4096     # beyond this, switch to per-degree K slabs + accumulator


def _round_up(x, m):
    return ((x + m - 1) // m) * m


@functools.lru_cache(maxsize=None)
def _vmem_limit_bytes():
    """Generation-aware scoped-VMEM limit: ~3/4 of physical, capped at 100 MiB."""
    phys = 64 * 1024 * 1024
    try:
        phys = int(pltpu.get_tpu_info().vmem_capacity_bytes)
    except Exception:
        pass
    return max(32 * 1024 * 1024, min((phys * 3) // 4, 100 * 1024 * 1024))


class _LayerGeom(NamedTuple):
    in_dim: int
    out_dim: int
    i_x: int      # lane-padded activation width fed to the kernel
    i_blk: int    # per-degree block width in the packed weight layout
    nk: int       # number of K slabs (reduction grid axis)
    tile_k: int   # K-slab width (multiple of 128)
    k_pad: int    # nk * tile_k
    no: int       # number of output tiles
    tile_o: int
    o_pad: int    # no * tile_o


def _layer_geometry(in_dim, out_dim, degree):
    dp1 = degree + 1
    i_pad = _round_up(in_dim, _LANE)
    k_packed = _round_up(dp1 * in_dim, _LANE)
    if k_packed <= _MAX_TILE_K:
        # Contiguous packing: degree blocks of width in_dim, only the total K
        # padded to 128 (no per-degree padding waste).
        nk, tile_k, i_blk, i_x = 1, k_packed, in_dim, i_pad
    else:
        # Large-K layers: one 128-aligned degree block per K slab so the
        # resident weight block stays small and basis slabs are indexed on the
        # leading scratch dim.
        nk, tile_k, i_blk, i_x = dp1, i_pad, i_pad, i_pad
    k_pad = nk * tile_k
    o_pad0 = _round_up(out_dim, _LANE)
    no = pl.cdiv(o_pad0, _MAX_TILE_O)
    tile_o = _round_up(pl.cdiv(o_pad0, no), _LANE)
    o_pad = no * tile_o
    return _LayerGeom(in_dim, out_dim, i_x, i_blk, nk, tile_k, k_pad, no, tile_o, o_pad)


def _pack_weight(coeffs_dio, geom):
    """(D+1, I, O) f32 -> (k_pad, o_pad) bf16, degree-major packed rows.

    Padded rows/cols MUST be zero: padded basis lanes are not zero, so zero
    weights are what keeps the padding inert.
    """
    dp1, i, o = coeffs_dio.shape
    w = jnp.asarray(coeffs_dio, jnp.float32)
    w = jnp.pad(w, ((0, 0), (0, geom.i_blk - i), (0, geom.o_pad - o)))
    w = w.reshape(dp1 * geom.i_blk, geom.o_pad)
    w = jnp.pad(w, ((0, geom.k_pad - dp1 * geom.i_blk), (0, 0)))
    return w.astype(jnp.bfloat16)


def prepare_hermite_kan_params(params, degree):
    """Pre-pad + pre-cast weights once, outside the per-call path."""
    prepared = []
    for w in params:
        geom = _layer_geometry(int(w.shape[1]), int(w.shape[2]), degree)
        prepared.append((geom, _pack_weight(w, geom)))
    return prepared


def _choose_batch_tiling(batch, *, row_bytes, row_budget, max_rows=256):
    """tile_b multiple of 8, never inflates tiny batches, capped by a VMEM budget."""
    cap = max(_SUBLANE, ((row_budget // max(row_bytes, 1)) // _SUBLANE) * _SUBLANE)
    max_rows = max(_SUBLANE, min(max_rows, cap))
    b_aligned = _round_up(max(batch, 1), _SUBLANE)
    if b_aligned <= max_rows:
        tile_b = b_aligned
    else:
        nb = pl.cdiv(b_aligned, max_rows)
        tile_b = _round_up(pl.cdiv(b_aligned, nb), _SUBLANE)
    return tile_b, _round_up(max(batch, 1), tile_b)


# ----------------------------- basis builder -----------------------------
def _emit_basis(basis_ref, x, *, degree, in_dim, nk, tile_k):
    """Write the bf16 Hermite basis of tanh(x) into the (nk, tile_b, tile_k) scratch.

    Packed layout (nk == 1): column d*in_dim + i  <->  H_d(tanh(x[:, i])), with a
    zero tail up to tile_k.  Slab layout (nk == degree+1): slab d holds the full
    128-padded H_d block (padded lanes give H_d(0) != 0; matching weight rows are
    zero).  Only H_{d-1}, H_{d-2} are kept live; blocks are stored as produced.
    """
    tile_b = x.shape[0]
    t = jnp.tanh(x)
    two_t = 2.0 * t
    k_real = (degree + 1) * in_dim

    if nk == 1 and in_dim % _LANE != 0:
        # Small/odd input dims: build the contiguously packed basis as one value
        # (minor-dim concat of in_dim-wide pieces) and do a single aligned store.
        pieces = [jnp.ones_like(t)[:, :in_dim]]
        if degree > 0:
            h2 = jnp.ones_like(t)
            h1 = two_t
            pieces.append(h1[:, :in_dim])
            for d in range(2, degree + 1):
                h = two_t * h1 - (2.0 * (d - 1)) * h2
                pieces.append(h[:, :in_dim])
                h2, h1 = h1, h
        if tile_k > k_real:
            pieces.append(jnp.zeros((tile_b, tile_k - k_real), jnp.float32))
        basis_ref[0] = jnp.concatenate(pieces, axis=-1).astype(jnp.bfloat16)
        return

    def emit(d, h):
        if nk > 1:
            basis_ref[d] = h.astype(jnp.bfloat16)          # aligned, one block per slab
        else:
            blk = h if h.shape[1] == in_dim else h[:, :in_dim]
            basis_ref[0, :, pl.ds(d * in_dim, in_dim)] = blk.astype(jnp.bfloat16)

    h2 = jnp.ones_like(t)
    emit(0, h2)
    if degree > 0:
        h1 = two_t
        emit(1, h1)
        for d in range(2, degree + 1):
            h = two_t * h1 - (2.0 * (d - 1)) * h2
            emit(d, h)
            h2, h1 = h1, h
    if nk == 1 and tile_k > k_real:
        basis_ref[0, :, pl.ds(k_real, tile_k - k_real)] = jnp.zeros(
            (tile_b, tile_k - k_real), jnp.bfloat16)


# ----------------------- per-layer kernel (general) -----------------------
def _layer_kernel(x_ref, w_ref, o_ref, basis_ref, acc_ref, *, degree, geom):
    n = pl.program_id(1)   # output tile
    k = pl.program_id(2)   # K slab (reduction)

    # Build the bf16 basis once per batch tile; cache across all (n, k) steps.
    @pl.when(jnp.logical_and(n == 0, k == 0))
    def _():
        _emit_basis(basis_ref, x_ref[...].astype(jnp.float32), degree=degree,
                    in_dim=geom.in_dim, nk=geom.nk, tile_k=geom.tile_k)

    @pl.when(k == 0)
    def _():
        acc_ref[...] = jnp.zeros_like(acc_ref)

    acc_ref[...] += jnp.dot(basis_ref[k], w_ref[...],
                            preferred_element_type=jnp.float32)

    @pl.when(k == pl.num_programs(2) - 1)
    def _():
        o_ref[...] = acc_ref[...]


def _layer_forward_packed(x, w_packed, geom, degree):
    B = x.shape[0]
    vmem_limit = _vmem_limit_bytes()
    # Per-row resident bytes: basis scratch + double-buffered x + (2x out + acc).
    row_bytes = geom.k_pad * 2 + geom.i_x * 8 + geom.tile_o * 12
    tile_b, b_pad = _choose_batch_tiling(B, row_bytes=row_bytes,
                                         row_budget=vmem_limit // 4)

    x_p = jnp.zeros((b_pad, geom.i_x), jnp.float32)
    x_p = x_p.at[:B, :geom.in_dim].set(x.astype(jnp.float32))

    nb = b_pad // tile_b
    kernel = functools.partial(_layer_kernel, degree=degree, geom=geom)
    cost = pl.CostEstimate(
        flops=int(2 * b_pad * geom.k_pad * geom.o_pad),
        transcendentals=int(b_pad * geom.i_x),
        # weights are re-streamed once per batch tile with the (b, n, k) order
        bytes_accessed=int(x_p.size * 4 + nb * int(w_packed.size) * 2
                           + b_pad * geom.o_pad * 4),
    )

    out = pl.pallas_call(
        kernel,
        out_shape=jax.ShapeDtypeStruct((b_pad, geom.o_pad), jnp.float32),
        grid_spec=pltpu.PrefetchScalarGridSpec(
            num_scalar_prefetch=0,
            grid=(nb, geom.no, geom.nk),
            in_specs=[
                pl.BlockSpec((tile_b, geom.i_x), lambda b, n, k: (b, 0)),
                pl.BlockSpec((geom.tile_k, geom.tile_o), lambda b, n, k: (k, n)),
            ],
            out_specs=pl.BlockSpec((tile_b, geom.tile_o), lambda b, n, k: (b, n)),
            scratch_shapes=[
                pltpu.VMEM((geom.nk, tile_b, geom.tile_k), jnp.bfloat16),  # cached basis
                pltpu.VMEM((tile_b, geom.tile_o), jnp.float32),            # f32 accumulator
            ],
        ),
        compiler_params=pltpu.CompilerParams(
            dimension_semantics=("parallel", "arbitrary", "arbitrary"),
            vmem_limit_bytes=vmem_limit),
        cost_estimate=cost,
    )(x_p, w_packed)
    return out[:B, :geom.out_dim]


def hermite_kan_layer(x, coeffs, degree):
    """One HermiteKANLayer forward.

    x:      (..., input_dim) float32 (reshaped to (-1, input_dim))
    coeffs: (degree+1, input_dim, output_dim) float32
            (transposed from PyTorch's (input_dim, output_dim, degree+1))
    """
    x2 = jnp.reshape(x, (-1, coeffs.shape[1]))
    geom = _layer_geometry(int(coeffs.shape[1]), int(coeffs.shape[2]), degree)
    return _layer_forward_packed(x2, _pack_weight(coeffs, geom), geom, degree)


# ------------------ fused whole-network kernel (small KANs) ------------------
def _fused_kan_kernel(x_ref, *refs, degree, geoms):
    num_layers = len(geoms)
    w_refs = refs[:num_layers]
    o_ref = refs[num_layers]
    basis_refs = refs[num_layers + 1:]
    h = x_ref[...].astype(jnp.float32)
    for geom, w_ref, b_ref in zip(geoms, w_refs, basis_refs):
        _emit_basis(b_ref, h, degree=degree, in_dim=geom.in_dim,
                    nk=1, tile_k=geom.tile_k)
        h = jnp.dot(b_ref[0], w_ref[...], preferred_element_type=jnp.float32)
    o_ref[...] = h


def _fits_fused(prepared):
    geoms = [g for g, _ in prepared]
    if any(g.nk != 1 for g in geoms):
        return False
    w_bytes = sum(2 * int(w.size) for _, w in prepared)   # bf16 bytes
    # Weights are whole-array resident (double-buffered) in the fused kernel.
    return 2 * w_bytes <= _vmem_limit_bytes() // 2


def _forward_fused(x2, prepared, degree):
    B = x2.shape[0]
    geoms = [g for g, _ in prepared]
    ws = [w for _, w in prepared]
    vmem_limit = _vmem_limit_bytes()
    row_bytes = (geoms[0].i_x * 8 + sum(g.k_pad * 2 + g.o_pad * 4 for g in geoms)
                 + geoms[-1].o_pad * 8)
    tile_b, b_pad = _choose_batch_tiling(B, row_bytes=row_bytes,
                                         row_budget=vmem_limit // 3)

    x_p = jnp.zeros((b_pad, geoms[0].i_x), jnp.float32)
    x_p = x_p.at[:B, :geoms[0].in_dim].set(x2.astype(jnp.float32))

    kernel = functools.partial(_fused_kan_kernel, degree=degree, geoms=tuple(geoms))
    in_specs = [pl.BlockSpec((tile_b, geoms[0].i_x), lambda b: (b, 0))]
    for _, w in prepared:
        in_specs.append(pl.BlockSpec(w.shape, lambda b: (0, 0)))
    scratch = [pltpu.VMEM((1, tile_b, g.tile_k), jnp.bfloat16) for g in geoms]

    cost = pl.CostEstimate(
        flops=int(sum(2 * b_pad * g.k_pad * g.o_pad for g in geoms)),
        transcendentals=int(sum(b_pad * g.i_x for g in geoms)),
        bytes_accessed=int(x_p.size * 4 + sum(int(w.size) * 2 for w in ws)
                           + b_pad * geoms[-1].o_pad * 4),
    )

    out = pl.pallas_call(
        kernel,
        out_shape=jax.ShapeDtypeStruct((b_pad, geoms[-1].o_pad), jnp.float32),
        grid_spec=pltpu.PrefetchScalarGridSpec(
            num_scalar_prefetch=0,
            grid=(b_pad // tile_b,),
            in_specs=in_specs,
            out_specs=pl.BlockSpec((tile_b, geoms[-1].o_pad), lambda b: (b, 0)),
            scratch_shapes=scratch,
        ),
        compiler_params=pltpu.CompilerParams(
            dimension_semantics=("parallel",),
            vmem_limit_bytes=vmem_limit),
        cost_estimate=cost,
    )(x_p, *ws)
    return out[:B, :geoms[-1].out_dim]


def hermite_kan_forward(x, prepared, layer_dims, degree):
    """Full HermiteKAN forward from prepared (pre-packed bf16) weights."""
    h = jnp.reshape(x, (-1, layer_dims[0])).astype(jnp.float32)
    if _fits_fused(prepared):
        return _forward_fused(h, prepared, degree)
    for geom, w in prepared:
        h = _layer_forward_packed(h, w, geom, degree)
    return h


def init_hermite_kan_params(key, layer_dims, degree):
    """Matches nn.init.normal_(std=1/(input_dim*(degree+1))); stored (D+1, I, O)."""
    params = []
    for i in range(len(layer_dims) - 1):
        key, sub = jax.random.split(key)
        in_dim, out_dim = layer_dims[i], layer_dims[i + 1]
        std = 1.0 / (in_dim * (degree + 1))
        params.append(std * jax.random.normal(
            sub, (degree + 1, in_dim, out_dim), dtype=jnp.float32))
    return params


# ----------------- pure-JAX reference (mirrors the PyTorch forward) -----------------
def _reference_layer(x, coeffs_dio, degree):
    x = jnp.reshape(x, (-1, coeffs_dio.shape[1]))
    x = jnp.tanh(x)
    herms = [jnp.ones_like(x)]
    if degree > 0:
        herms.append(2.0 * x)
    for i in range(2, degree + 1):
        herms.append(2.0 * x * herms[i - 1] - 2.0 * (i - 1) * herms[i - 2])
    hermite = jnp.stack(herms, axis=-1)                  # (B, I, D+1)
    coeffs_iod = jnp.transpose(coeffs_dio, (1, 2, 0))    # (I, O, D+1)
    return jnp.einsum('bid,iod->bo', hermite, coeffs_iod,
                      precision=jax.lax.Precision.HIGHEST)


def _reference_forward(x, params, layer_dims, degree):
    h = jnp.reshape(x, (-1, layer_dims[0])).astype(jnp.float32)
    for w in params:
        h = _reference_layer(h, w, degree)
    return h


if __name__ == "__main__":
    layer_dims = [32, 64, 16]
    degree = 3
    batch = 8

    key = jax.random.PRNGKey(0)
    key, xkey = jax.random.split(key)
    x = jax.random.normal(xkey, (batch, layer_dims[0]), dtype=jnp.float32)
    params = init_hermite_kan_params(key, layer_dims, degree)
    prepared = prepare_hermite_kan_params(params, degree)   # pack/pad/cast once

    # Primary path: fused whole-network kernel (single pallas_call, packed K).
    out = jax.block_until_ready(hermite_kan_forward(x, prepared, layer_dims, degree))
    ref = _reference_forward(x, params, layer_dims, degree)
    assert out.shape == (batch, layer_dims[-1])
    # bf16 MXU operands with f32 accumulation -> small deltas vs f32 reference.
    assert jnp.allclose(out, ref, atol=3e-3, rtol=2e-2), "fused kernel mismatch"

    # General per-layer kernel path (packed-K, basis cached across output tiles).
    h = x
    for w in params:
        h = hermite_kan_layer(h, w, degree)
    out_layered = jax.block_until_ready(h)
    assert out_layered.shape == (batch, layer_dims[-1])
    assert jnp.allclose(out_layered, ref, atol=3e-3, rtol=2e-2), "layer kernel mismatch"

    # Aligned-input path (in_dim % 128 == 0) with an odd output dim.
    key, k1, k2 = jax.random.split(key, 3)
    xb = jax.random.normal(k1, (16, 128), jnp.float32)
    wb = (1.0 / (128 * (degree + 1))) * jax.random.normal(
        k2, (degree + 1, 128, 160), jnp.float32)
    out_b = jax.block_until_ready(hermite_kan_layer(xb, wb, degree))
    assert jnp.allclose(out_b, _reference_layer(xb, wb, degree),
                        atol=3e-3, rtol=2e-2), "aligned layer mismatch"

    # K-slab (accumulator) path for a larger, non-aligned input dim.
    key, k3, k4 = jax.random.split(key, 3)
    xc = jax.random.normal(k3, (24, 1088), jnp.float32)
    wc = (1.0 / (1088 * (degree + 1))) * jax.random.normal(
        k4, (degree + 1, 1088, 192), jnp.float32)
    out_c = jax.block_until_ready(hermite_kan_layer(xc, wc, degree))
    assert jnp.allclose(out_c, _reference_layer(xc, wc, degree),
                        atol=3e-3, rtol=2e-2), "K-slab layer mismatch"

    print("KERNEL_OK")
</pallas_src>

<mosaic_0001>
module attributes {stable_mosaic.version = 11 : i64} {
  func.func @_fused_kan_kernel(%arg0: i32, %arg1: memref<8x128xf32, #tpu.memory_space<vmem>>, %arg2: memref<128x128xbf16, #tpu.memory_space<vmem>>, %arg3: memref<256x128xbf16, #tpu.memory_space<vmem>>, %arg4: memref<8x128xf32, #tpu.memory_space<vmem>>, %arg5: memref<1x8x128xbf16, #tpu.memory_space<vmem>>, %arg6: memref<1x8x256xbf16, #tpu.memory_space<vmem>>) attributes {dimension_semantics = [#tpu.dimension_semantics<parallel>], iteration_bounds = array<i64: 1>, scalar_prefetch = 0 : i64, scratch_operands = 2 : i64, tpu.core_type = #tpu.core_type<tc>, window_params = [{transform_indices = @transform_0, window_bounds = array<i64: 8, 128>}, {pipeline_mode = #tpu.pipeline_mode<synchronous>, transform_indices = @transform_1, window_bounds = array<i64: 128, 128>}, {pipeline_mode = #tpu.pipeline_mode<synchronous>, transform_indices = @transform_2, window_bounds = array<i64: 256, 128>}, {transform_indices = @transform_3, window_bounds = array<i64: 8, 128>}]} {
    %c0 = arith.constant 0 : index
    %c0_0 = arith.constant 0 : index
    %0 = vector.load %arg1[%c0, %c0_0] : memref<8x128xf32, #tpu.memory_space<vmem>>, vector<8x128xf32>
    %1 = math.tanh %0 : vector<8x128xf32>
    %cst = arith.constant 2.000000e+00 : f32
    %2 = vector.broadcast %cst : f32 to vector<8x128xf32>
    %3 = arith.mulf %2, %1 : vector<8x128xf32>
    %cst_1 = arith.constant 1.000000e+00 : f32
    %4 = vector.broadcast %cst_1 : f32 to vector<8x128xf32>
    %5 = vector.extract_strided_slice %4 {offsets = [0, 0], sizes = [8, 32], strides = [1, 1]} : vector<8x128xf32> to vector<8x32xf32>
    %cst_2 = arith.constant 1.000000e+00 : f32
    %6 = vector.broadcast %cst_2 : f32 to vector<8x128xf32>
    %7 = vector.extract_strided_slice %3 {offsets = [0, 0], sizes = [8, 32], strides = [1, 1]} : vector<8x128xf32> to vector<8x32xf32>
    %8 = arith.mulf %3, %3 : vector<8x128xf32>
    %cst_3 = arith.constant 2.000000e+00 : f32
    %9 = vector.broadcast %cst_3 : f32 to vector<8x128xf32>
    %10 = arith.mulf %9, %6 : vector<8x128xf32>
    %11 = arith.subf %8, %10 : vector<8x128xf32>
    %12 = vector.extract_strided_slice %11 {offsets = [0, 0], sizes = [8, 32], strides = [1, 1]} : vector<8x128xf32> to vector<8x32xf32>
    %13 = arith.mulf %3, %11 : vector<8x128xf32>
    %cst_4 = arith.constant 4.000000e+00 : f32
    %14 = vector.broadcast %cst_4 : f32 to vector<8x128xf32>
    %15 = arith.mulf %14, %3 : vector<8x128xf32>
    %16 = arith.subf %13, %15 : vector<8x128xf32>
    %17 = vector.extract_strided_slice %16 {offsets = [0, 0], sizes = [8, 32], strides = [1, 1]} : vector<8x128xf32> to vector<8x32xf32>
    %18 = tpu.concatenate %5, %7, %12, %17 in 1 : vector<8x32xf32>, vector<8x32xf32>, vector<8x32xf32>, vector<8x32xf32> -> vector<8x128xf32>
    %19 = arith.truncf %18 : vector<8x128xf32> to vector<8x128xbf16>
    %c0_5 = arith.constant 0 : index
    %c0_6 = arith.constant 0 : index
    %c0_7 = arith.constant 0 : index
    %20 = vector.load %arg5[%c0_5, %c0_6, %c0_7] : memref<1x8x128xbf16, #tpu.memory_space<vmem>>, vector<1x8x128xbf16>
    %21 = vector.shape_cast %20 : vector<1x8x128xbf16> to vector<8x128xbf16>
    %22 = vector.shape_cast %19 : vector<8x128xbf16> to vector<1x8x128xbf16>
    tpu.vector_store %arg5[%c0_5, %c0_6, %c0_7], %22 {strides = array<i32>} : memref<1x8x128xbf16, #tpu.memory_space<vmem>>, vector<1x8x128xbf16>,
    %c0_8 = arith.constant 0 : index
    %c0_9 = arith.constant 0 : index
    %c0_10 = arith.constant 0 : index
    %23 = vector.load %arg5[%c0_8, %c0_9, %c0_10] : memref<1x8x128xbf16, #tpu.memory_space<vmem>>, vector<1x8x128xbf16>
    %24 = vector.shape_cast %23 : vector<1x8x128xbf16> to vector<8x128xbf16>
    %c0_11 = arith.constant 0 : index
    %c0_12 = arith.constant 0 : index
    %25 = vector.load %arg2[%c0_11, %c0_12] : memref<128x128xbf16, #tpu.memory_space<vmem>>, vector<128x128xbf16>
    %cst_13 = arith.constant dense<0.000000e+00> : vector<8x128xf32>
    %26 = tpu.matmul %24, %25, %cst_13 {dimension_numbers = #tpu.dot_dimension_numbers<[1], [0], [0], [1], [0, 0, 1, 1], [], []>} : vector<8x128xbf16>, vector<128x128xbf16>, vector<8x128xf32> -> vector<8x128xf32>
    %27 = math.tanh %26 : vector<8x128xf32>
    %cst_14 = arith.constant 2.000000e+00 : f32
    %28 = vector.broadcast %cst_14 : f32 to vector<8x128xf32>
    %29 = arith.mulf %28, %27 : vector<8x128xf32>
    %cst_15 = arith.constant 1.000000e+00 : f32
    %30 = vector.broadcast %cst_15 : f32 to vector<8x128xf32>
    %31 = vector.extract_strided_slice %30 {offsets = [0, 0], sizes = [8, 64], strides = [1, 1]} : vector<8x128xf32> to vector<8x64xf32>
    %cst_16 = arith.constant 1.000000e+00 : f32
    %32 = vector.broadcast %cst_16 : f32 to vector<8x128xf32>
    %33 = vector.extract_strided_slice %29 {offsets = [0, 0], sizes = [8, 64], strides = [1, 1]} : vector<8x128xf32> to vector<8x64xf32>
    %34 = arith.mulf %29, %29 : vector<8x128xf32>
    %cst_17 = arith.constant 2.000000e+00 : f32
    %35 = vector.broadcast %cst_17 : f32 to vector<8x128xf32>
    %36 = arith.mulf %35, %32 : vector<8x128xf32>
    %37 = arith.subf %34, %36 : vector<8x128xf32>
    %38 = vector.extract_strided_slice %37 {offsets = [0, 0], sizes = [8, 64], strides = [1, 1]} : vector<8x128xf32> to vector<8x64xf32>
    %39 = arith.mulf %29, %37 : vector<8x128xf32>
    %cst_18 = arith.constant 4.000000e+00 : f32
    %40 = vector.broadcast %cst_18 : f32 to vector<8x128xf32>
    %41 = arith.mulf %40, %29 : vector<8x128xf32>
    %42 = arith.subf %39, %41 : vector<8x128xf32>
    %43 = vector.extract_strided_slice %42 {offsets = [0, 0], sizes = [8, 64], strides = [1, 1]} : vector<8x128xf32> to vector<8x64xf32>
    %44 = tpu.concatenate %31, %33, %38, %43 in 1 : vector<8x64xf32>, vector<8x64xf32>, vector<8x64xf32>, vector<8x64xf32> -> vector<8x256xf32>
    %45 = arith.truncf %44 : vector<8x256xf32> to vector<8x256xbf16>
    %c0_19 = arith.constant 0 : index
    %c0_20 = arith.constant 0 : index
    %c0_21 = arith.constant 0 : index
    %46 = vector.load %arg6[%c0_19, %c0_20, %c0_21] : memref<1x8x256xbf16, #tpu.memory_space<vmem>>, vector<1x8x256xbf16>
    %47 = vector.shape_cast %46 : vector<1x8x256xbf16> to vector<8x256xbf16>
    %48 = vector.shape_cast %45 : vector<8x256xbf16> to vector<1x8x256xbf16>
    tpu.vector_store %arg6[%c0_19, %c0_20, %c0_21], %48 {strides = array<i32>} : memref<1x8x256xbf16, #tpu.memory_space<vmem>>, vector<1x8x256xbf16>,
    %c0_22 = arith.constant 0 : index
    %c0_23 = arith.constant 0 : index
    %c0_24 = arith.constant 0 : index
    %49 = vector.load %arg6[%c0_22, %c0_23, %c0_24] : memref<1x8x256xbf16, #tpu.memory_space<vmem>>, vector<1x8x256xbf16>
    %50 = vector.shape_cast %49 : vector<1x8x256xbf16> to vector<8x256xbf16>
    %c0_25 = arith.constant 0 : index
    %c0_26 = arith.constant 0 : index
    %51 = vector.load %arg3[%c0_25, %c0_26] : memref<256x128xbf16, #tpu.memory_space<vmem>>, vector<256x128xbf16>
    %cst_27 = arith.constant dense<0.000000e+00> : vector<8x128xf32>
    %52 = tpu.matmul %50, %51, %cst_27 {dimension_numbers = #tpu.dot_dimension_numbers<[1], [0], [0], [1], [0, 0, 1, 1], [], []>} : vector<8x256xbf16>, vector<256x128xbf16>, vector<8x128xf32> -> vector<8x128xf32>
    %c0_28 = arith.constant 0 : index
    %c0_29 = arith.constant 0 : index
    %53 = vector.load %arg4[%c0_28, %c0_29] : memref<8x128xf32, #tpu.memory_space<vmem>>, vector<8x128xf32>
    tpu.vector_store %arg4[%c0_28, %c0_29], %52 {strides = array<i32>} : memref<8x128xf32, #tpu.memory_space<vmem>>, vector<8x128xf32>,
    return
  }
  func.func @transform_0(%arg0: i32) -> (i32, i32) {
    %c0_i32 = arith.constant 0 : i32
    %c0_i32_0 = arith.constant 0 : i32
    return %arg0, %c0_i32 : i32, i32
  }
  func.func @transform_1(%arg0: i32) -> (i32, i32) {
    %c0_i32 = arith.constant 0 : i32
    %c0_i32_0 = arith.constant 0 : i32
    %c0_i32_1 = arith.constant 0 : i32
    return %c0_i32, %c0_i32_0 : i32, i32
  }
  func.func @transform_2(%arg0: i32) -> (i32, i32) {
    %c0_i32 = arith.constant 0 : i32
    %c0_i32_0 = arith.constant 0 : i32
    %c0_i32_1 = arith.constant 0 : i32
    return %c0_i32, %c0_i32_0 : i32, i32
  }
  func.func @transform_3(%arg0: i32) -> (i32, i32) {
    %c0_i32 = arith.constant 0 : i32
    %c0_i32_0 = arith.constant 0 : i32
    return %arg0, %c0_i32 : i32, i32
  }
}

</mosaic_0001>

<llo_original>
// kernel: tpu_custom_call.1
$region0: #{tpu_custom_call.1}
  #allocation0 [shape = 'u32[]', space=smem, size = 0x4, offset = 0x4, fixed_abs, tag = 'smem constant byte address 0x4 - core index']
  #allocation1 [shape = 'u32[144,128]{1,0:T(1,128)}', space=vmem, size = 0x12000, scoped, tag = 'internal scratch']
  #allocation2 [shape = 'bf16[1,8,128]{2,1,0:T(8,128)(2,1)}', space=vmem, size = 0x800, scoped, tag = 'scratch operand']
  #allocation3 [shape = 'bf16[1,8,256]{2,1,0:T(8,128)(2,1)}', space=vmem, size = 0x1000, scoped, tag = 'scratch operand']
  %s0 = inlined_call_operand.hbm [shape: f32[8,128], index: 0, kind: input, shape index: {}]
  %s1 = inlined_call_operand.hbm [shape: bf16[128,128], index: 1, kind: input, shape index: {}]
  %s2 = inlined_call_operand.hbm [shape: bf16[256,128], index: 2, kind: input, shape index: {}]
  %s3 = inlined_call_operand.hbm [shape: f32[8,128], index: 3, kind: output, shape index: {}]
  %s4 = sld [smem:[#allocation0]]
  $region34: #{tpu_custom_call.1} parent=0
    _
  %s6 = ssub.s32 1, %s4
  %s7 = scalar_select 0, %s6, %s4
  $region1: #{tpu_custom_call.1} parent=0
    #allocation4 [shape = 'u8[4096]{0}', space=vmem, size = 0x1000, scoped, tag = 'input window, operand 0, single buffered']
    #allocation5 [shape = 's32[1]{0}', space=sflag, size = 0x4, scoped, tag = 'scoped memory for tpu_custom_call.1']
    #allocation6 [shape = 's32[1]{0}', space=sflag, size = 0x4, scoped, tag = 'scoped memory for tpu_custom_call.1']
    #allocation7 [shape = 'u8[32768]{0}', space=vmem, size = 0x8000, scoped, tag = 'input window, operand 1, single buffered']
    #allocation8 [shape = 's32[1]{0}', space=sflag, size = 0x4, scoped, tag = 'scoped memory for tpu_custom_call.1']
    #allocation9 [shape = 'u8[65536]{0}', space=vmem, size = 0x10000, scoped, tag = 'input window, operand 2, single buffered']
    #allocation10 [shape = 'u8[4096]{0}', space=vmem, size = 0x1000, scoped, tag = 'output window, operand 0, single buffered']
    %8 = vsyncpa [#allocation5], 0
    %9 = vsyncpa [#allocation8], 0
    %10 = vsyncpa [#allocation6], 0
    // Predicated region
    $region2: #{tpu_custom_call.1} parent=1 // pred_check
      _
    $region3: #{tpu_custom_call.1} parent=1 // pred_check_branch
      %12 = sbr.rel (0) target = $region5
    $region4: #{tpu_custom_call.1} parent=1 // pred_region
      %s14 = ssub.s32 128, 128
      %15 = vsyncadd [#allocation5], %s14
      %s17 = sshll.u32 [#allocation4], 4
      %s18 = int_to_ptr.vmem [resolvable:$true] %s17
      %20 = dma.hbm_to_vmem [thread:$0]  %s0, 128, %s18, [#allocation5]
    $region5: #{tpu_custom_call.1} parent=1 // pred_fallthru
      _
    // Predicated region
    $region6: #{tpu_custom_call.1} parent=1 // pred_check
      _
    $region7: #{tpu_custom_call.1} parent=1 // pred_check_branch
      %22 = sbr.rel (0) target = $region9
    $region8: #{tpu_custom_call.1} parent=1 // pred_region
      %s24 = ssub.s32 1024, 1024
      %25 = vsyncadd [#allocation8], %s24
      %s26 = sshll.u32 [#allocation7], 4
      %s27 = int_to_ptr.vmem [resolvable:$true] %s26
      %32 = dma.hbm_to_vmem [thread:$0]  %s1, 1024, %s27, [#allocation8], 64, 64, 4
    $region9: #{tpu_custom_call.1} parent=1 // pred_fallthru
      _
    // Predicated region
    $region10: #{tpu_custom_call.1} parent=1 // pred_check
      _
    $region11: #{tpu_custom_call.1} parent=1 // pred_check_branch
      %34 = sbr.rel (0) target = $region13
    $region12: #{tpu_custom_call.1} parent=1 // pred_region
      %s36 = ssub.s32 2048, 2048
      %37 = vsyncadd [#allocation8], %s36
      %s38 = sshll.u32 [#allocation9], 4
      %s39 = int_to_ptr.vmem [resolvable:$true] %s38
      %44 = dma.hbm_to_vmem [thread:$0]  %s2, 2048, %s39, [#allocation8], 64, 64, 4
    $region13: #{tpu_custom_call.1} parent=1 // pred_fallthru
      _
    // Predicated region
    $region14: #{tpu_custom_call.1} parent=1 // pred_check
      _
    $region15: #{tpu_custom_call.1} parent=1 // pred_check_branch
      %46 = sbr.rel (0) target = $region17
    $region16: #{tpu_custom_call.1} parent=1 // pred_region
      %47 = dma.done [#allocation5], 128
    $region17: #{tpu_custom_call.1} parent=1 // pred_fallthru
      _
    // Predicated region
    $region18: #{tpu_custom_call.1} parent=1 // pred_check
      _
    $region19: #{tpu_custom_call.1} parent=1 // pred_check_branch
      %49 = sbr.rel (0) target = $region21
    $region20: #{tpu_custom_call.1} parent=1 // pred_region
      %50 = dma.done [#allocation8], 1024
    $region21: #{tpu_custom_call.1} parent=1 // pred_fallthru
      _
    // Predicated region
    $region22: #{tpu_custom_call.1} parent=1 // pred_check
      _
    $region23: #{tpu_custom_call.1} parent=1 // pred_check_branch
      %52 = sbr.rel (0) target = $region25
    $region24: #{tpu_custom_call.1} parent=1 // pred_region
      %53 = dma.done [#allocation8], 2048
    $region25: #{tpu_custom_call.1} parent=1 // pred_fallthru
      _
    %v55 = vld [vmem:[#allocation4] sm:$0xff]
    %v56 = vtanh.pop %v55
    %v57 = vmul.f32 %v56, 2.0
    %v58 = vmul.f32 %v57, %v57
    %v59 = vsub.f32 %v58, 2.0
    %v60 = vmul.f32 %v57, %v59
    %v61 = vmul.f32 %v57, 4.0
    %v62 = vsub.f32 %v60, %v61
    %64 = vrot.lane.b32.xlu0 %v57, 32
    %v65 = vpop.permute.xlu0 %64
    %68 = vrot.lane.b32.xlu0 %v59, 64
    %v69 = vpop.permute.xlu0 %68
    %72 = vrot.lane.b32.xlu0 %v62, 96
    %v73 = vpop.permute.xlu0 %72
    %vm75 = vcmask 261120
    %v76 = vsel %vm75, 1.0, %v65
    %vm77 = vcmask 523264
    %v78 = vsel %vm77, %v76, %v69
    %vm79 = vcmask 785408
    %v80 = vsel %vm79, %v78, %v73
    %v81 = vpack.c.bf16 %v80, %v80
    %82 = vst [vmem:[#allocation2] sm:$0xf] %v81
    %v83 = vld [vmem:[#allocation2] sm:$0xf]
    %v84 = vld [vmem:[#allocation7] sm:$0xf]
    %v85 = vld [vmem:[#allocation7 + $0x4] sm:$0xf]
    %v86 = vld [vmem:[#allocation7 + $0x8] sm:$0xf]
    %v87 = vld [vmem:[#allocation7 + $0xc] sm:$0xf]
    %v88 = vld [vmem:[#allocation7 + $0x10] sm:$0xf]
    %v89 = vld [vmem:[#allocation7 + $0x14] sm:$0xf]
    %v90 = vld [vmem:[#allocation7 + $0x18] sm:$0xf]
    %v91 = vld [vmem:[#allocation7 + $0x1c] sm:$0xf]
    %v92 = vld [vmem:[#allocation7 + $0x20] sm:$0xf]
    %v93 = vld [vmem:[#allocation7 + $0x24] sm:$0xf]
    %v94 = vld [vmem:[#allocation7 + $0x28] sm:$0xf]
    %v95 = vld [vmem:[#allocation7 + $0x2c] sm:$0xf]
    %v96 = vld [vmem:[#allocation7 + $0x30] sm:$0xf]
    %v97 = vld [vmem:[#allocation7 + $0x34] sm:$0xf]
    %v98 = vld [vmem:[#allocation7 + $0x38] sm:$0xf]
    %v99 = vld [vmem:[#allocation7 + $0x3c] sm:$0xf]
    %v116 = vunpack.c.l.b16 %v84
    %v117 = vunpack.c.l.b16 %v85
    %v118 = vunpack.c.l.b16 %v86
    %v119 = vunpack.c.l.b16 %v87
    %v120 = vunpack.c.l.b16 %v88
    %v121 = vunpack.c.l.b16 %v89
    %v122 = vunpack.c.l.b16 %v90
    %v123 = vunpack.c.l.b16 %v91
    %v124 = vunpack.c.l.b16 %v92
    %v125 = vunpack.c.l.b16 %v93
    %v126 = vunpack.c.l.b16 %v94
    %v127 = vunpack.c.l.b16 %v95
    %v128 = vunpack.c.l.b16 %v96
    %v129 = vunpack.c.l.b16 %v97
    %v130 = vunpack.c.l.b16 %v98
    %v131 = vunpack.c.l.b16 %v99
    %v132 = vpack.c.b16 %v117, %v116
    %v133 = vpack.c.b16 %v119, %v118
    %v134 = vpack.c.b16 %v121, %v120
    %v135 = vpack.c.b16 %v123, %v122
    %v136 = vpack.c.b16 %v125, %v124
    %v137 = vpack.c.b16 %v127, %v126
    %v138 = vpack.c.b16 %v129, %v128
    %v139 = vpack.c.b16 %v131, %v130
    %148 = vmatprep.subr.bf16.mxu0 0
    %149 = vmatpush1.bf16.msra.mxu0 %v132
    %150 = vmatprep.subr.bf16.mxu0 0
    %151 = vmatpush1.bf16.msra.mxu0 %v133
    %152 = vmatprep.subr.bf16.mxu0 0
    %153 = vmatpush1.bf16.msra.mxu0 %v134
    %154 = vmatprep.subr.bf16.mxu0 0
    %155 = vmatpush1.bf16.msra.mxu0 %v135
    %156 = vmatprep.subr.bf16.mxu0 0
    %157 = vmatpush1.bf16.msra.mxu0 %v136
    %158 = vmatprep.subr.bf16.mxu0 0
    %159 = vmatpush1.bf16.msra.mxu0 %v137
    %160 = vmatprep.subr.bf16.mxu0 0
    %161 = vmatpush1.bf16.msra.mxu0 %v138
    %162 = vmatprep.subr.bf16.mxu0 0
    %163 = vmatpush1.bf16.msra.mxu0 %v139
    %164 = vmatprep.subr.bf16.mxu0 0
    %165 = vmatpush1.bf16.msra.mxu0 0
    %166 = vmatprep.subr.bf16.mxu0 0
    %167 = vmatpush1.bf16.msra.mxu0 0
    %168 = vmatprep.subr.bf16.mxu0 0
    %169 = vmatpush1.bf16.msra.mxu0 0
    %170 = vmatprep.subr.bf16.mxu0 0
    %171 = vmatpush1.bf16.msra.mxu0 0
    %172 = vmatprep.subr.bf16.mxu0 0
    %173 = vmatpush1.bf16.msra.mxu0 0
    %174 = vmatprep.subr.bf16.mxu0 0
    %175 = vmatpush1.bf16.msra.mxu0 0
    %176 = vmatprep.subr.bf16.mxu0 0
    %177 = vmatpush1.bf16.msra.mxu0 0
    %178 = vmatprep.subr.bf16.mxu0 0
    %179 = vmatpush1.bf16.msra.mxu0 0
    %180 = vmatprep.mubr.bf16.mxu0 0
    %181 = vmatmul.mubr.bf16.gmra.mrb[0].mxu0 %v83
    %v182 = vpop.f32.mrb[0].mxu0
    %v183 = vadd.f32 0.0, %v182
    %v184 = vpop.f32.mrb[0].mxu0
    %v185 = vpop.f32.mrb[0].mxu0
    %v186 = vpop.f32.mrb[0].mxu0
    %187 = vdwg.mxu0
    %v188 = vtanh.pop %v183
    %v189 = vmul.f32 %v188, 2.0
    %v190 = vmul.f32 %v189, %v189
    %v191 = vsub.f32 %v190, 2.0
    %v192 = vmul.f32 %v189, %v191
    %v193 = vmul.f32 %v189, 4.0
    %v194 = vsub.f32 %v192, %v193
    %196 = vrot.lane.b32.xlu0 %v189, 64
    %v197 = vpop.permute.xlu0 %196
    %200 = vrot.lane.b32.xlu0 %v194, 64
    %v201 = vpop.permute.xlu0 %200
    %v203 = vsel %vm77, 1.0, %v197
    %v204 = vsel %vm77, %v191, %v201
    %v205 = vpack.c.bf16 %v203, %v203
    %v206 = vpack.c.bf16 %v204, %v204
    %v209 = vunpack.c.l.b16 %v205
    %v210 = vunpack.c.l.b16 %v206
    %v211 = vpack.c.b16 %v210, %v209
    %213 = vst [vmem:[#allocation3] sm:$0xff] %v211
    %v214 = vld [vmem:[#allocation3] sm:$0xff]
    %v215 = vld [vmem:[#allocation9] sm:$0xf]
    %v216 = vld [vmem:[#allocation9 + $0x4] sm:$0xf]
    %v217 = vld [vmem:[#allocation9 + $0x8] sm:$0xf]
    %v218 = vld [vmem:[#allocation9 + $0xc] sm:$0xf]
    %v219 = vld [vmem:[#allocation9 + $0x10] sm:$0xf]
    %v220 = vld [vmem:[#allocation9 + $0x14] sm:$0xf]
    %v221 = vld [vmem:[#allocation9 + $0x18] sm:$0xf]
    %v222 = vld [vmem:[#allocation9 + $0x1c] sm:$0xf]
    %v223 = vld [vmem:[#allocation9 + $0x20] sm:$0xf]
    %v224 = vld [vmem:[#allocation9 + $0x24] sm:$0xf]
    %v225 = vld [vmem:[#allocation9 + $0x28] sm:$0xf]
    %v226 = vld [vmem:[#allocation9 + $0x2c] sm:$0xf]
    %v227 = vld [vmem:[#allocation9 + $0x30] sm:$0xf]
    %v228 = vld [vmem:[#allocation9 + $0x34] sm:$0xf]
    %v229 = vld [vmem:[#allocation9 + $0x38] sm:$0xf]
    %v230 = vld [vmem:[#allocation9 + $0x3c] sm:$0xf]
    %v231 = vld [vmem:[#allocation9 + $0x40] sm:$0xf]
    %v232 = vld [vmem:[#allocation9 + $0x44] sm:$0xf]
    %v233 = vld [vmem:[#allocation9 + $0x48] sm:$0xf]
    %v234 = vld [vmem:[#allocation9 + $0x4c] sm:$0xf]
    %v235 = vld [vmem:[#allocation9 + $0x50] sm:$0xf]
    %v236 = vld [vmem:[#allocation9 + $0x54] sm:$0xf]
    %v237 = vld [vmem:[#allocation9 + $0x58] sm:$0xf]
    %v238 = vld [vmem:[#allocation9 + $0x5c] sm:$0xf]
    %v239 = vld [vmem:[#allocation9 + $0x60] sm:$0xf]
    %v240 = vld [vmem:[#allocation9 + $0x64] sm:$0xf]
    %v241 = vld [vmem:[#allocation9 + $0x68] sm:$0xf]
    %v242 = vld [vmem:[#allocation9 + $0x6c] sm:$0xf]
    %v243 = vld [vmem:[#allocation9 + $0x70] sm:$0xf]
    %v244 = vld [vmem:[#allocation9 + $0x74] sm:$0xf]
    %v245 = vld [vmem:[#allocation9 + $0x78] sm:$0xf]
    %v246 = vld [vmem:[#allocation9 + $0x7c] sm:$0xf]
    %v248 = vunpack.c.l.b16 %v214
    %v249 = vunpack.c.h.b16 %v214
    %v250 = vpack.c.b16 %v248, %v248
    %v251 = vpack.c.b16 %v249, %v249
    %v286 = vunpack.c.l.b16 %v215
    %v287 = vunpack.c.l.b16 %v216
    %v288 = vunpack.c.l.b16 %v217
    %v289 = vunpack.c.l.b16 %v218
    %v290 = vunpack.c.l.b16 %v219
    %v291 = vunpack.c.l.b16 %v220
    %v292 = vunpack.c.l.b16 %v221
    %v293 = vunpack.c.l.b16 %v222
    %v294 = vunpack.c.l.b16 %v223
    %v295 = vunpack.c.l.b16 %v224
    %v296 = vunpack.c.l.b16 %v225
    %v297 = vunpack.c.l.b16 %v226
    %v298 = vunpack.c.l.b16 %v227
    %v299 = vunpack.c.l.b16 %v228
    %v300 = vunpack.c.l.b16 %v229
    %v301 = vunpack.c.l.b16 %v230
    %v302 = vunpack.c.l.b16 %v231
    %v303 = vunpack.c.l.b16 %v232
    %v304 = vunpack.c.l.b16 %v233
    %v305 = vunpack.c.l.b16 %v234
    %v306 = vunpack.c.l.b16 %v235
    %v307 = vunpack.c.l.b16 %v236
    %v308 = vunpack.c.l.b16 %v237
    %v309 = vunpack.c.l.b16 %v238
    %v310 = vunpack.c.l.b16 %v239
    %v311 = vunpack.c.l.b16 %v240
    %v312 = vunpack.c.l.b16 %v241
    %v313 = vunpack.c.l.b16 %v242
    %v314 = vunpack.c.l.b16 %v243
    %v315 = vunpack.c.l.b16 %v244
    %v316 = vunpack.c.l.b16 %v245
    %v317 = vunpack.c.l.b16 %v246
    %v318 = vpack.c.b16 %v287, %v286
    %v319 = vpack.c.b16 %v289, %v288
    %v320 = vpack.c.b16 %v291, %v290
    %v321 = vpack.c.b16 %v293, %v292
    %v322 = vpack.c.b16 %v295, %v294
    %v323 = vpack.c.b16 %v297, %v296
    %v324 = vpack.c.b16 %v299, %v298
    %v325 = vpack.c.b16 %v301, %v300
    %v326 = vpack.c.b16 %v303, %v302
    %v327 = vpack.c.b16 %v305, %v304
    %v328 = vpack.c.b16 %v307, %v306
    %v329 = vpack.c.b16 %v309, %v308
    %v330 = vpack.c.b16 %v311, %v310
    %v331 = vpack.c.b16 %v313, %v312
    %v332 = vpack.c.b16 %v315, %v314
    %v333 = vpack.c.b16 %v317, %v316
    %350 = vmatprep.subr.bf16.mxu0 0
    %351 = vmatpush1.bf16.msra.mxu0 %v318
    %352 = vmatprep.subr.bf16.mxu0 0
    %353 = vmatpush1.bf16.msra.mxu0 %v319
    %354 = vmatprep.subr.bf16.mxu0 0
    %355 = vmatpush1.bf16.msra.mxu0 %v320
    %356 = vmatprep.subr.bf16.mxu0 0
    %357 = vmatpush1.bf16.msra.mxu0 %v321
    %358 = vmatprep.subr.bf16.mxu0 0
    %359 = vmatpush1.bf16.msra.mxu0 %v322
    %360 = vmatprep.subr.bf16.mxu0 0
    %361 = vmatpush1.bf16.msra.mxu0 %v323
    %362 = vmatprep.subr.bf16.mxu0 0
    %363 = vmatpush1.bf16.msra.mxu0 %v324
    %364 = vmatprep.subr.bf16.mxu0 0
    %365 = vmatpush1.bf16.msra.mxu0 %v325
    %366 = vmatprep.subr.bf16.mxu0 0
    %367 = vmatpush1.bf16.msra.mxu0 %v326
    %368 = vmatprep.subr.bf16.mxu0 0
    %369 = vmatpush1.bf16.msra.mxu0 %v327
    %370 = vmatprep.subr.bf16.mxu0 0
    %371 = vmatpush1.bf16.msra.mxu0 %v328
    %372 = vmatprep.subr.bf16.mxu0 0
    %373 = vmatpush1.bf16.msra.mxu0 %v329
    %374 = vmatprep.subr.bf16.mxu0 0
    %375 = vmatpush1.bf16.msra.mxu0 %v330
    %376 = vmatprep.subr.bf16.mxu0 0
    %377 = vmatpush1.bf16.msra.mxu0 %v331
    %378 = vmatprep.subr.bf16.mxu0 0
    %379 = vmatpush1.bf16.msra.mxu0 %v332
    %380 = vmatprep.subr.bf16.mxu0 0
    %381 = vmatpush1.bf16.msra.mxu0 %v333
    %382 = vmatprep.mubr.bf16.mxu0 %v251
    %383 = vmatmul.mubr.bf16.gmra.mrb[0].mxu0 %v250
    %v384 = vpop.f32.mrb[0].mxu0
    %v385 = vadd.f32 0.0, %v384
    %v386 = vpop.f32.mrb[0].mxu0
    %v387 = vpop.f32.mrb[0].mxu0
    %v388 = vpop.f32.mrb[0].mxu0
    %389 = vdwg.mxu0
    %390 = vst [vmem:[#allocation10] sm:$0xff] %v385
    // Predicated region
    $region26: #{tpu_custom_call.1} parent=1 // pred_check
      _
    $region27: #{tpu_custom_call.1} parent=1 // pred_check_branch
      %392 = sbr.rel (0) target = $region29
    $region28: #{tpu_custom_call.1} parent=1 // pred_region
      %s394 = ssub.s32 128, 128
      %395 = vsyncadd [#allocation6], %s394
      %s397 = sshll.u32 [#allocation10], 4
      %s398 = int_to_ptr.vmem [resolvable:$true] %s397
      %400 = dma.vmem_to_hbm [thread:$0]  %s398, 128, %s3, [#allocation6]
    $region29: #{tpu_custom_call.1} parent=1 // pred_fallthru
      _
    // Predicated region
    $region30: #{tpu_custom_call.1} parent=1 // pred_check
      _
    $region31: #{tpu_custom_call.1} parent=1 // pred_check_branch
      %402 = sbr.rel (0) target = $region33
    $region32: #{tpu_custom_call.1} parent=1 // pred_region
      %403 = dma.done [#allocation6], 128
    $region33: #{tpu_custom_call.1} parent=1 // pred_fallthru
      _
    %404 = vsyncpa [#allocation5], 1
    %405 = vsyncpa [#allocation8], 1
    %406 = vsyncpa [#allocation6], 1

</llo_original>
